<compile_context>
chip_gen: v6e
topology: v6e:2x2x1
jax: 0.10.0
libtpu: 0.0.40
codegen_flags: <defaults>
</compile_context>

<pallas_src>
import jax
import jax.numpy as jnp
import numpy as np
from jax.experimental import pallas as pl
from jax.experimental.pallas import tpu as pltpu

INPUT_DIM = 32
TARGET_DIM = 16
NUM_EXPERTS = 4
TOP_K = 2
BATCH = 8
HIDDEN = INPUT_DIM // 2 + TARGET_DIM // 2  # 24


# ---------------- fused Pallas kernel ----------------

def _make_moe_kernel(num_experts, top_k):
    E = num_experts
    K = top_k

    def moe_kernel(x_ref, wg_ref, bg_ref, w1_ref, b1_ref, w2_ref, b2_ref,
                   out_ref, gates_ref):
        # x_ref:  (E, B, D)    wg_ref: (1, D)   bg_ref: (1, 1)
        # w1_ref: (E, D, H)    b1_ref: (E, 1, H)
        # w2_ref: (E, H, T)    b2_ref: (E, 1, T)
        # out_ref: (B, T)      gates_ref: (B, K)
        x = x_ref[...]                                   # (E, B, D)
        B = x.shape[1]

        # ---- gating logits: (B, E), batch on sublanes, experts on lanes ----
        wg = wg_ref[...]                                 # (1, D)
        cols = [jnp.sum(x[e] * wg, axis=-1, keepdims=True) for e in range(E)]
        logits = jnp.concatenate(cols, axis=1) + bg_ref[...]   # (B, E)

        # ---- softmax over experts (exact divide; keeps gates bit-close to ref) ----
        m = jnp.max(logits, axis=1, keepdims=True)
        ex = jnp.exp(logits - m)
        probs = ex / jnp.sum(ex, axis=1, keepdims=True)        # (B, E)

        # ---- in-kernel top-k: iterative max, lowest-index tie-break
        #      (matches jax.lax.top_k / torch.topk ordering) ----
        col = jax.lax.broadcasted_iota(jnp.int32, (B, E), 1)
        vals, idxs = [], []
        work = probs
        for _ in range(K):
            v = jnp.max(work, axis=1, keepdims=True)                        # (B, 1)
            i = jnp.min(jnp.where(work == v, col, E), axis=1, keepdims=True)  # (B, 1)
            vals.append(v)
            idxs.append(i)
            work = jnp.where(col == i, -jnp.inf, work)

        # ---- experts: compute once per token, combine with routing weights ----
        w1 = w1_ref[...]
        b1 = b1_ref[...]
        w2 = w2_ref[...]
        b2 = b2_ref[...]
        acc = jnp.zeros(out_ref.shape, jnp.float32)
        for e in range(E):
            h = jnp.maximum(
                jnp.dot(x[e], w1[e], preferred_element_type=jnp.float32) + b1[e],
                0.0)                                                        # (B, H)
            o = jnp.dot(h, w2[e], preferred_element_type=jnp.float32) + b2[e]  # (B, T)
            weight = vals[0] * (idxs[0] == e).astype(jnp.float32)           # (B, 1)
            for k in range(1, K):
                weight = weight + vals[k] * (idxs[k] == e).astype(jnp.float32)
            acc = acc + weight * o

        out_ref[...] = acc
        gates_ref[...] = jnp.concatenate(vals, axis=1)

    return moe_kernel


# ---------------- wrapper ----------------

def moe_forward(x_stacked, wg, bg, w1, b1, w2, b2, top_k):
    E, B, D = x_stacked.shape
    T = w2.shape[2]
    kernel = _make_moe_kernel(E, top_k)

    vmem = lambda: pl.BlockSpec(memory_space=pltpu.MemorySpace.VMEM)
    out, gates = pl.pallas_call(
        kernel,
        out_shape=(jax.ShapeDtypeStruct((B, T), jnp.float32),
                   jax.ShapeDtypeStruct((B, top_k), jnp.float32)),
        in_specs=[vmem() for _ in range(7)],
        out_specs=(vmem(), vmem()),
    )(x_stacked, wg, bg, w1, b1, w2, b2)
    return out, gates


# ---------------- pure-JAX reference (mirrors the torch forward) ----------------

def moe_ref(x_stacked, wg, bg, w1, b1, w2, b2, top_k):
    E, B, D = x_stacked.shape
    T = w2.shape[2]
    logits = jnp.concatenate([x_stacked[i] @ wg.T + bg for i in range(E)], axis=1)
    probs = jax.nn.softmax(logits, axis=1)
    vals, idx = jax.lax.top_k(probs, top_k)
    acc = jnp.zeros((B, top_k, T), jnp.float32)
    for i in range(E):
        mask = (idx == i).astype(jnp.float32)[:, :, None]
        sel = x_stacked[i][:, None, :] * mask
        h = jax.nn.relu(sel @ w1[i] + b1[i])
        o = h @ w2[i] + b2[i]
        acc = acc + o * mask
    out = (vals[:, :, None] * acc).sum(1)
    return out, vals


if __name__ == "__main__":
    key = jax.random.PRNGKey(0)
    ks = jax.random.split(key, 8)

    def uinit(k, shape, fan_in):
        bound = 1.0 / np.sqrt(fan_in)
        return jax.random.uniform(k, shape, jnp.float32, -bound, bound)

    # x is the list of per-expert inputs, stacked: (num_experts, batch, input_dim)
    x_stacked = jax.random.normal(ks[0], (NUM_EXPERTS, BATCH, INPUT_DIM), jnp.float32)

    # gating: nn.Linear(input_dim, 1)
    wg = uinit(ks[1], (1, INPUT_DIM), INPUT_DIM)
    bg = uinit(ks[2], (1, 1), INPUT_DIM)
    # experts: Linear(D, H) -> ReLU -> Linear(H, T), stored as (E, in, out)
    w1 = uinit(ks[3], (NUM_EXPERTS, INPUT_DIM, HIDDEN), INPUT_DIM)
    b1 = uinit(ks[4], (NUM_EXPERTS, 1, HIDDEN), INPUT_DIM)
    w2 = uinit(ks[5], (NUM_EXPERTS, HIDDEN, TARGET_DIM), HIDDEN)
    b2 = uinit(ks[6], (NUM_EXPERTS, 1, TARGET_DIM), HIDDEN)

    fwd = jax.jit(moe_forward, static_argnums=7)
    out, gates = fwd(x_stacked, wg, bg, w1, b1, w2, b2, TOP_K)
    jax.block_until_ready((out, gates))

    out_r, gates_r = moe_ref(x_stacked, wg, bg, w1, b1, w2, b2, TOP_K)
    np.testing.assert_allclose(np.asarray(out), np.asarray(out_r), rtol=1e-4, atol=1e-4)
    np.testing.assert_allclose(np.asarray(gates), np.asarray(gates_r), rtol=1e-5, atol=1e-6)

    print("KERNEL_OK")
</pallas_src>

<mosaic_0001>
module attributes {stable_mosaic.version = 11 : i64} {
  func.func @moe_kernel(%arg0: memref<4x8x32xf32, #tpu.memory_space<vmem>>, %arg1: memref<1x32xf32, #tpu.memory_space<vmem>>, %arg2: memref<1x1xf32, #tpu.memory_space<vmem>>, %arg3: memref<4x32x24xf32, #tpu.memory_space<vmem>>, %arg4: memref<4x1x24xf32, #tpu.memory_space<vmem>>, %arg5: memref<4x24x16xf32, #tpu.memory_space<vmem>>, %arg6: memref<4x1x16xf32, #tpu.memory_space<vmem>>, %arg7: memref<8x16xf32, #tpu.memory_space<vmem>>, %arg8: memref<8x2xf32, #tpu.memory_space<vmem>>) attributes {dimension_semantics = [], scalar_prefetch = 0 : i64, scratch_operands = 0 : i64, tpu.core_type = #tpu.core_type<tc>} {
    %c0 = arith.constant 0 : index
    %c0_0 = arith.constant 0 : index
    %c0_1 = arith.constant 0 : index
    %0 = vector.load %arg0[%c0, %c0_0, %c0_1] : memref<4x8x32xf32, #tpu.memory_space<vmem>>, vector<4x8x32xf32>
    %c0_2 = arith.constant 0 : index
    %c0_3 = arith.constant 0 : index
    %1 = vector.load %arg1[%c0_2, %c0_3] : memref<1x32xf32, #tpu.memory_space<vmem>>, vector<1x32xf32>
    %2 = vector.extract_strided_slice %0 {offsets = [0, 0, 0], sizes = [1, 8, 32], strides = [1, 1, 1]} : vector<4x8x32xf32> to vector<1x8x32xf32>
    %3 = vector.shape_cast %2 : vector<1x8x32xf32> to vector<8x32xf32>
    %4 = vector.broadcast %1 : vector<1x32xf32> to vector<8x32xf32>
    %5 = arith.mulf %3, %4 : vector<8x32xf32>
    %cst = arith.constant dense<0.000000e+00> : vector<8xf32>
    %6 = vector.multi_reduction <add>, %5, %cst [1] : vector<8x32xf32> to vector<8xf32>
    %7 = vector.shape_cast %6 : vector<8xf32> to vector<8x1xf32>
    %8 = vector.extract_strided_slice %0 {offsets = [1, 0, 0], sizes = [1, 8, 32], strides = [1, 1, 1]} : vector<4x8x32xf32> to vector<1x8x32xf32>
    %9 = vector.shape_cast %8 : vector<1x8x32xf32> to vector<8x32xf32>
    %10 = vector.broadcast %1 : vector<1x32xf32> to vector<8x32xf32>
    %11 = arith.mulf %9, %10 : vector<8x32xf32>
    %cst_4 = arith.constant dense<0.000000e+00> : vector<8xf32>
    %12 = vector.multi_reduction <add>, %11, %cst_4 [1] : vector<8x32xf32> to vector<8xf32>
    %13 = vector.shape_cast %12 : vector<8xf32> to vector<8x1xf32>
    %14 = vector.extract_strided_slice %0 {offsets = [2, 0, 0], sizes = [1, 8, 32], strides = [1, 1, 1]} : vector<4x8x32xf32> to vector<1x8x32xf32>
    %15 = vector.shape_cast %14 : vector<1x8x32xf32> to vector<8x32xf32>
    %16 = vector.broadcast %1 : vector<1x32xf32> to vector<8x32xf32>
    %17 = arith.mulf %15, %16 : vector<8x32xf32>
    %cst_5 = arith.constant dense<0.000000e+00> : vector<8xf32>
    %18 = vector.multi_reduction <add>, %17, %cst_5 [1] : vector<8x32xf32> to vector<8xf32>
    %19 = vector.shape_cast %18 : vector<8xf32> to vector<8x1xf32>
    %20 = vector.extract_strided_slice %0 {offsets = [3, 0, 0], sizes = [1, 8, 32], strides = [1, 1, 1]} : vector<4x8x32xf32> to vector<1x8x32xf32>
    %21 = vector.shape_cast %20 : vector<1x8x32xf32> to vector<8x32xf32>
    %22 = vector.broadcast %1 : vector<1x32xf32> to vector<8x32xf32>
    %23 = arith.mulf %21, %22 : vector<8x32xf32>
    %cst_6 = arith.constant dense<0.000000e+00> : vector<8xf32>
    %24 = vector.multi_reduction <add>, %23, %cst_6 [1] : vector<8x32xf32> to vector<8xf32>
    %25 = vector.shape_cast %24 : vector<8xf32> to vector<8x1xf32>
    %26 = tpu.concatenate %7, %13, %19, %25 in 1 : vector<8x1xf32>, vector<8x1xf32>, vector<8x1xf32>, vector<8x1xf32> -> vector<8x4xf32>
    %c0_7 = arith.constant 0 : index
    %c0_8 = arith.constant 0 : index
    %27 = vector.load %arg2[%c0_7, %c0_8] : memref<1x1xf32, #tpu.memory_space<vmem>>, vector<1x1xf32>
    %28 = vector.broadcast %27 : vector<1x1xf32> to vector<8x4xf32>
    %29 = arith.addf %26, %28 : vector<8x4xf32>
    %cst_9 = arith.constant dense<0xFF800000> : vector<8xf32>
    %30 = vector.multi_reduction <maximumf>, %29, %cst_9 [1] : vector<8x4xf32> to vector<8xf32>
    %31 = vector.shape_cast %30 : vector<8xf32> to vector<8x1xf32>
    %32 = vector.broadcast %31 : vector<8x1xf32> to vector<8x4xf32>
    %33 = arith.subf %29, %32 : vector<8x4xf32>
    %34 = math.exp %33 : vector<8x4xf32>
    %cst_10 = arith.constant dense<0.000000e+00> : vector<8xf32>
    %35 = vector.multi_reduction <add>, %34, %cst_10 [1] : vector<8x4xf32> to vector<8xf32>
    %36 = vector.shape_cast %35 : vector<8xf32> to vector<8x1xf32>
    %37 = vector.broadcast %36 : vector<8x1xf32> to vector<8x4xf32>
    %38 = arith.divf %34, %37 : vector<8x4xf32>
    %39 = tpu.iota {dimensions = array<i32: 1>} : vector<8x4xi32>
    %cst_11 = arith.constant dense<0xFF800000> : vector<8xf32>
    %40 = vector.multi_reduction <maximumf>, %38, %cst_11 [1] : vector<8x4xf32> to vector<8xf32>
    %41 = vector.shape_cast %40 : vector<8xf32> to vector<8x1xf32>
    %42 = vector.broadcast %41 : vector<8x1xf32> to vector<8x4xf32>
    %43 = arith.cmpf oeq, %38, %42 : vector<8x4xf32>
    %c4_i32 = arith.constant 4 : i32
    %44 = vector.broadcast %c4_i32 : i32 to vector<8x4xi32>
    %45 = arith.select %43, %39, %44 : vector<8x4xi1>, vector<8x4xi32>
    %cst_12 = arith.constant dense<2147483647> : vector<8xi32>
    %46 = vector.multi_reduction <minsi>, %45, %cst_12 [1] : vector<8x4xi32> to vector<8xi32>
    %47 = vector.shape_cast %46 : vector<8xi32> to vector<8x1xi32>
    %48 = vector.broadcast %47 : vector<8x1xi32> to vector<8x4xi32>
    %49 = arith.cmpi eq, %39, %48 : vector<8x4xi32>
    %cst_13 = arith.constant 0xFF800000 : f32
    %50 = vector.broadcast %cst_13 : f32 to vector<8x4xf32>
    %51 = arith.select %49, %50, %38 : vector<8x4xi1>, vector<8x4xf32>
    %cst_14 = arith.constant dense<0xFF800000> : vector<8xf32>
    %52 = vector.multi_reduction <maximumf>, %51, %cst_14 [1] : vector<8x4xf32> to vector<8xf32>
    %53 = vector.shape_cast %52 : vector<8xf32> to vector<8x1xf32>
    %54 = vector.broadcast %53 : vector<8x1xf32> to vector<8x4xf32>
    %55 = arith.cmpf oeq, %51, %54 : vector<8x4xf32>
    %c4_i32_15 = arith.constant 4 : i32
    %56 = vector.broadcast %c4_i32_15 : i32 to vector<8x4xi32>
    %57 = arith.select %55, %39, %56 : vector<8x4xi1>, vector<8x4xi32>
    %cst_16 = arith.constant dense<2147483647> : vector<8xi32>
    %58 = vector.multi_reduction <minsi>, %57, %cst_16 [1] : vector<8x4xi32> to vector<8xi32>
    %59 = vector.shape_cast %58 : vector<8xi32> to vector<8x1xi32>
    %c0_17 = arith.constant 0 : index
    %c0_18 = arith.constant 0 : index
    %c0_19 = arith.constant 0 : index
    %60 = vector.load %arg3[%c0_17, %c0_18, %c0_19] : memref<4x32x24xf32, #tpu.memory_space<vmem>>, vector<4x32x24xf32>
    %c0_20 = arith.constant 0 : index
    %c0_21 = arith.constant 0 : index
    %c0_22 = arith.constant 0 : index
    %61 = vector.load %arg4[%c0_20, %c0_21, %c0_22] : memref<4x1x24xf32, #tpu.memory_space<vmem>>, vector<4x1x24xf32>
    %c0_23 = arith.constant 0 : index
    %c0_24 = arith.constant 0 : index
    %c0_25 = arith.constant 0 : index
    %62 = vector.load %arg5[%c0_23, %c0_24, %c0_25] : memref<4x24x16xf32, #tpu.memory_space<vmem>>, vector<4x24x16xf32>
    %c0_26 = arith.constant 0 : index
    %c0_27 = arith.constant 0 : index
    %c0_28 = arith.constant 0 : index
    %63 = vector.load %arg6[%c0_26, %c0_27, %c0_28] : memref<4x1x16xf32, #tpu.memory_space<vmem>>, vector<4x1x16xf32>
    %cst_29 = arith.constant 0.000000e+00 : f32
    %64 = vector.broadcast %cst_29 : f32 to vector<8x16xf32>
    %65 = vector.extract_strided_slice %0 {offsets = [0, 0, 0], sizes = [1, 8, 32], strides = [1, 1, 1]} : vector<4x8x32xf32> to vector<1x8x32xf32>
    %66 = vector.shape_cast %65 : vector<1x8x32xf32> to vector<8x32xf32>
    %67 = vector.extract_strided_slice %60 {offsets = [0, 0, 0], sizes = [1, 32, 24], strides = [1, 1, 1]} : vector<4x32x24xf32> to vector<1x32x24xf32>
    %68 = vector.shape_cast %67 : vector<1x32x24xf32> to vector<32x24xf32>
    %cst_30 = arith.constant dense<0.000000e+00> : vector<8x24xf32>
    %69 = tpu.matmul %66, %68, %cst_30 {dimension_numbers = #tpu.dot_dimension_numbers<[1], [0], [0], [1], [0, 0, 1, 1], [], []>} : vector<8x32xf32>, vector<32x24xf32>, vector<8x24xf32> -> vector<8x24xf32>
    %70 = vector.extract_strided_slice %61 {offsets = [0, 0, 0], sizes = [1, 1, 24], strides = [1, 1, 1]} : vector<4x1x24xf32> to vector<1x1x24xf32>
    %71 = vector.shape_cast %70 : vector<1x1x24xf32> to vector<1x24xf32>
    %72 = vector.broadcast %71 : vector<1x24xf32> to vector<8x24xf32>
    %73 = arith.addf %69, %72 : vector<8x24xf32>
    %cst_31 = arith.constant 0.000000e+00 : f32
    %74 = vector.broadcast %cst_31 : f32 to vector<8x24xf32>
    %75 = arith.maximumf %73, %74 : vector<8x24xf32>
    %76 = vector.extract_strided_slice %62 {offsets = [0, 0, 0], sizes = [1, 24, 16], strides = [1, 1, 1]} : vector<4x24x16xf32> to vector<1x24x16xf32>
    %77 = vector.shape_cast %76 : vector<1x24x16xf32> to vector<24x16xf32>
    %cst_32 = arith.constant dense<0.000000e+00> : vector<8x16xf32>
    %78 = tpu.matmul %75, %77, %cst_32 {dimension_numbers = #tpu.dot_dimension_numbers<[1], [0], [0], [1], [0, 0, 1, 1], [], []>} : vector<8x24xf32>, vector<24x16xf32>, vector<8x16xf32> -> vector<8x16xf32>
    %79 = vector.extract_strided_slice %63 {offsets = [0, 0, 0], sizes = [1, 1, 16], strides = [1, 1, 1]} : vector<4x1x16xf32> to vector<1x1x16xf32>
    %80 = vector.shape_cast %79 : vector<1x1x16xf32> to vector<1x16xf32>
    %81 = vector.broadcast %80 : vector<1x16xf32> to vector<8x16xf32>
    %82 = arith.addf %78, %81 : vector<8x16xf32>
    %c0_i32 = arith.constant 0 : i32
    %83 = vector.broadcast %c0_i32 : i32 to vector<8x1xi32>
    %84 = arith.cmpi eq, %47, %83 : vector<8x1xi32>
    %85 = arith.extui %84 : vector<8x1xi1> to vector<8x1xi32>
    %86 = arith.sitofp %85 : vector<8x1xi32> to vector<8x1xf32>
    %87 = arith.mulf %41, %86 : vector<8x1xf32>
    %c0_i32_33 = arith.constant 0 : i32
    %88 = vector.broadcast %c0_i32_33 : i32 to vector<8x1xi32>
    %89 = arith.cmpi eq, %59, %88 : vector<8x1xi32>
    %90 = arith.extui %89 : vector<8x1xi1> to vector<8x1xi32>
    %91 = arith.sitofp %90 : vector<8x1xi32> to vector<8x1xf32>
    %92 = arith.mulf %53, %91 : vector<8x1xf32>
    %93 = arith.addf %87, %92 : vector<8x1xf32>
    %94 = vector.broadcast %93 : vector<8x1xf32> to vector<8x16xf32>
    %95 = arith.mulf %94, %82 : vector<8x16xf32>
    %96 = arith.addf %64, %95 : vector<8x16xf32>
    %97 = vector.extract_strided_slice %0 {offsets = [1, 0, 0], sizes = [1, 8, 32], strides = [1, 1, 1]} : vector<4x8x32xf32> to vector<1x8x32xf32>
    %98 = vector.shape_cast %97 : vector<1x8x32xf32> to vector<8x32xf32>
    %99 = vector.extract_strided_slice %60 {offsets = [1, 0, 0], sizes = [1, 32, 24], strides = [1, 1, 1]} : vector<4x32x24xf32> to vector<1x32x24xf32>
    %100 = vector.shape_cast %99 : vector<1x32x24xf32> to vector<32x24xf32>
    %cst_34 = arith.constant dense<0.000000e+00> : vector<8x24xf32>
    %101 = tpu.matmul %98, %100, %cst_34 {dimension_numbers = #tpu.dot_dimension_numbers<[1], [0], [0], [1], [0, 0, 1, 1], [], []>} : vector<8x32xf32>, vector<32x24xf32>, vector<8x24xf32> -> vector<8x24xf32>
    %102 = vector.extract_strided_slice %61 {offsets = [1, 0, 0], sizes = [1, 1, 24], strides = [1, 1, 1]} : vector<4x1x24xf32> to vector<1x1x24xf32>
    %103 = vector.shape_cast %102 : vector<1x1x24xf32> to vector<1x24xf32>
    %104 = vector.broadcast %103 : vector<1x24xf32> to vector<8x24xf32>
    %105 = arith.addf %101, %104 : vector<8x24xf32>
    %cst_35 = arith.constant 0.000000e+00 : f32
    %106 = vector.broadcast %cst_35 : f32 to vector<8x24xf32>
    %107 = arith.maximumf %105, %106 : vector<8x24xf32>
    %108 = vector.extract_strided_slice %62 {offsets = [1, 0, 0], sizes = [1, 24, 16], strides = [1, 1, 1]} : vector<4x24x16xf32> to vector<1x24x16xf32>
    %109 = vector.shape_cast %108 : vector<1x24x16xf32> to vector<24x16xf32>
    %cst_36 = arith.constant dense<0.000000e+00> : vector<8x16xf32>
    %110 = tpu.matmul %107, %109, %cst_36 {dimension_numbers = #tpu.dot_dimension_numbers<[1], [0], [0], [1], [0, 0, 1, 1], [], []>} : vector<8x24xf32>, vector<24x16xf32>, vector<8x16xf32> -> vector<8x16xf32>
    %111 = vector.extract_strided_slice %63 {offsets = [1, 0, 0], sizes = [1, 1, 16], strides = [1, 1, 1]} : vector<4x1x16xf32> to vector<1x1x16xf32>
    %112 = vector.shape_cast %111 : vector<1x1x16xf32> to vector<1x16xf32>
    %113 = vector.broadcast %112 : vector<1x16xf32> to vector<8x16xf32>
    %114 = arith.addf %110, %113 : vector<8x16xf32>
    %c1_i32 = arith.constant 1 : i32
    %115 = vector.broadcast %c1_i32 : i32 to vector<8x1xi32>
    %116 = arith.cmpi eq, %47, %115 : vector<8x1xi32>
    %117 = arith.extui %116 : vector<8x1xi1> to vector<8x1xi32>
    %118 = arith.sitofp %117 : vector<8x1xi32> to vector<8x1xf32>
    %119 = arith.mulf %41, %118 : vector<8x1xf32>
    %c1_i32_37 = arith.constant 1 : i32
    %120 = vector.broadcast %c1_i32_37 : i32 to vector<8x1xi32>
    %121 = arith.cmpi eq, %59, %120 : vector<8x1xi32>
    %122 = arith.extui %121 : vector<8x1xi1> to vector<8x1xi32>
    %123 = arith.sitofp %122 : vector<8x1xi32> to vector<8x1xf32>
    %124 = arith.mulf %53, %123 : vector<8x1xf32>
    %125 = arith.addf %119, %124 : vector<8x1xf32>
    %126 = vector.broadcast %125 : vector<8x1xf32> to vector<8x16xf32>
    %127 = arith.mulf %126, %114 : vector<8x16xf32>
    %128 = arith.addf %96, %127 : vector<8x16xf32>
    %129 = vector.extract_strided_slice %0 {offsets = [2, 0, 0], sizes = [1, 8, 32], strides = [1, 1, 1]} : vector<4x8x32xf32> to vector<1x8x32xf32>
    %130 = vector.shape_cast %129 : vector<1x8x32xf32> to vector<8x32xf32>
    %131 = vector.extract_strided_slice %60 {offsets = [2, 0, 0], sizes = [1, 32, 24], strides = [1, 1, 1]} : vector<4x32x24xf32> to vector<1x32x24xf32>
    %132 = vector.shape_cast %131 : vector<1x32x24xf32> to vector<32x24xf32>
    %cst_38 = arith.constant dense<0.000000e+00> : vector<8x24xf32>
    %133 = tpu.matmul %130, %132, %cst_38 {dimension_numbers = #tpu.dot_dimension_numbers<[1], [0], [0], [1], [0, 0, 1, 1], [], []>} : vector<8x32xf32>, vector<32x24xf32>, vector<8x24xf32> -> vector<8x24xf32>
    %134 = vector.extract_strided_slice %61 {offsets = [2, 0, 0], sizes = [1, 1, 24], strides = [1, 1, 1]} : vector<4x1x24xf32> to vector<1x1x24xf32>
    %135 = vector.shape_cast %134 : vector<1x1x24xf32> to vector<1x24xf32>
    %136 = vector.broadcast %135 : vector<1x24xf32> to vector<8x24xf32>
    %137 = arith.addf %133, %136 : vector<8x24xf32>
    %cst_39 = arith.constant 0.000000e+00 : f32
    %138 = vector.broadcast %cst_39 : f32 to vector<8x24xf32>
    %139 = arith.maximumf %137, %138 : vector<8x24xf32>
    %140 = vector.extract_strided_slice %62 {offsets = [2, 0, 0], sizes = [1, 24, 16], strides = [1, 1, 1]} : vector<4x24x16xf32> to vector<1x24x16xf32>
    %141 = vector.shape_cast %140 : vector<1x24x16xf32> to vector<24x16xf32>
    %cst_40 = arith.constant dense<0.000000e+00> : vector<8x16xf32>
    %142 = tpu.matmul %139, %141, %cst_40 {dimension_numbers = #tpu.dot_dimension_numbers<[1], [0], [0], [1], [0, 0, 1, 1], [], []>} : vector<8x24xf32>, vector<24x16xf32>, vector<8x16xf32> -> vector<8x16xf32>
    %143 = vector.extract_strided_slice %63 {offsets = [2, 0, 0], sizes = [1, 1, 16], strides = [1, 1, 1]} : vector<4x1x16xf32> to vector<1x1x16xf32>
    %144 = vector.shape_cast %143 : vector<1x1x16xf32> to vector<1x16xf32>
    %145 = vector.broadcast %144 : vector<1x16xf32> to vector<8x16xf32>
    %146 = arith.addf %142, %145 : vector<8x16xf32>
    %c2_i32 = arith.constant 2 : i32
    %147 = vector.broadcast %c2_i32 : i32 to vector<8x1xi32>
    %148 = arith.cmpi eq, %47, %147 : vector<8x1xi32>
    %149 = arith.extui %148 : vector<8x1xi1> to vector<8x1xi32>
    %150 = arith.sitofp %149 : vector<8x1xi32> to vector<8x1xf32>
    %151 = arith.mulf %41, %150 : vector<8x1xf32>
    %c2_i32_41 = arith.constant 2 : i32
    %152 = vector.broadcast %c2_i32_41 : i32 to vector<8x1xi32>
    %153 = arith.cmpi eq, %59, %152 : vector<8x1xi32>
    %154 = arith.extui %153 : vector<8x1xi1> to vector<8x1xi32>
    %155 = arith.sitofp %154 : vector<8x1xi32> to vector<8x1xf32>
    %156 = arith.mulf %53, %155 : vector<8x1xf32>
    %157 = arith.addf %151, %156 : vector<8x1xf32>
    %158 = vector.broadcast %157 : vector<8x1xf32> to vector<8x16xf32>
    %159 = arith.mulf %158, %146 : vector<8x16xf32>
    %160 = arith.addf %128, %159 : vector<8x16xf32>
    %161 = vector.extract_strided_slice %0 {offsets = [3, 0, 0], sizes = [1, 8, 32], strides = [1, 1, 1]} : vector<4x8x32xf32> to vector<1x8x32xf32>
    %162 = vector.shape_cast %161 : vector<1x8x32xf32> to vector<8x32xf32>
    %163 = vector.extract_strided_slice %60 {offsets = [3, 0, 0], sizes = [1, 32, 24], strides = [1, 1, 1]} : vector<4x32x24xf32> to vector<1x32x24xf32>
    %164 = vector.shape_cast %163 : vector<1x32x24xf32> to vector<32x24xf32>
    %cst_42 = arith.constant dense<0.000000e+00> : vector<8x24xf32>
    %165 = tpu.matmul %162, %164, %cst_42 {dimension_numbers = #tpu.dot_dimension_numbers<[1], [0], [0], [1], [0, 0, 1, 1], [], []>} : vector<8x32xf32>, vector<32x24xf32>, vector<8x24xf32> -> vector<8x24xf32>
    %166 = vector.extract_strided_slice %61 {offsets = [3, 0, 0], sizes = [1, 1, 24], strides = [1, 1, 1]} : vector<4x1x24xf32> to vector<1x1x24xf32>
    %167 = vector.shape_cast %166 : vector<1x1x24xf32> to vector<1x24xf32>
    %168 = vector.broadcast %167 : vector<1x24xf32> to vector<8x24xf32>
    %169 = arith.addf %165, %168 : vector<8x24xf32>
    %cst_43 = arith.constant 0.000000e+00 : f32
    %170 = vector.broadcast %cst_43 : f32 to vector<8x24xf32>
    %171 = arith.maximumf %169, %170 : vector<8x24xf32>
    %172 = vector.extract_strided_slice %62 {offsets = [3, 0, 0], sizes = [1, 24, 16], strides = [1, 1, 1]} : vector<4x24x16xf32> to vector<1x24x16xf32>
    %173 = vector.shape_cast %172 : vector<1x24x16xf32> to vector<24x16xf32>
    %cst_44 = arith.constant dense<0.000000e+00> : vector<8x16xf32>
    %174 = tpu.matmul %171, %173, %cst_44 {dimension_numbers = #tpu.dot_dimension_numbers<[1], [0], [0], [1], [0, 0, 1, 1], [], []>} : vector<8x24xf32>, vector<24x16xf32>, vector<8x16xf32> -> vector<8x16xf32>
    %175 = vector.extract_strided_slice %63 {offsets = [3, 0, 0], sizes = [1, 1, 16], strides = [1, 1, 1]} : vector<4x1x16xf32> to vector<1x1x16xf32>
    %176 = vector.shape_cast %175 : vector<1x1x16xf32> to vector<1x16xf32>
    %177 = vector.broadcast %176 : vector<1x16xf32> to vector<8x16xf32>
    %178 = arith.addf %174, %177 : vector<8x16xf32>
    %c3_i32 = arith.constant 3 : i32
    %179 = vector.broadcast %c3_i32 : i32 to vector<8x1xi32>
    %180 = arith.cmpi eq, %47, %179 : vector<8x1xi32>
    %181 = arith.extui %180 : vector<8x1xi1> to vector<8x1xi32>
    %182 = arith.sitofp %181 : vector<8x1xi32> to vector<8x1xf32>
    %183 = arith.mulf %41, %182 : vector<8x1xf32>
    %c3_i32_45 = arith.constant 3 : i32
    %184 = vector.broadcast %c3_i32_45 : i32 to vector<8x1xi32>
    %185 = arith.cmpi eq, %59, %184 : vector<8x1xi32>
    %186 = arith.extui %185 : vector<8x1xi1> to vector<8x1xi32>
    %187 = arith.sitofp %186 : vector<8x1xi32> to vector<8x1xf32>
    %188 = arith.mulf %53, %187 : vector<8x1xf32>
    %189 = arith.addf %183, %188 : vector<8x1xf32>
    %190 = vector.broadcast %189 : vector<8x1xf32> to vector<8x16xf32>
    %191 = arith.mulf %190, %178 : vector<8x16xf32>
    %192 = arith.addf %160, %191 : vector<8x16xf32>
    %c0_46 = arith.constant 0 : index
    %c0_47 = arith.constant 0 : index
    %193 = vector.load %arg7[%c0_46, %c0_47] : memref<8x16xf32, #tpu.memory_space<vmem>>, vector<8x16xf32>
    tpu.vector_store %arg7[%c0_46, %c0_47], %192 {strides = array<i32>} : memref<8x16xf32, #tpu.memory_space<vmem>>, vector<8x16xf32>,
    %194 = tpu.concatenate %41, %53 in 1 : vector<8x1xf32>, vector<8x1xf32> -> vector<8x2xf32>
    %c0_48 = arith.constant 0 : index
    %c0_49 = arith.constant 0 : index
    %195 = vector.load %arg8[%c0_48, %c0_49] : memref<8x2xf32, #tpu.memory_space<vmem>>, vector<8x2xf32>
    tpu.vector_store %arg8[%c0_48, %c0_49], %194 {strides = array<i32>} : memref<8x2xf32, #tpu.memory_space<vmem>>, vector<8x2xf32>,
    return
  }
}

</mosaic_0001>

<llo_original>
// kernel: moe_forward.1
$region0: #{moe_forward.1}
  #allocation0 [shape = 'u32[]', space=smem, size = 0x4, offset = 0x4, fixed_abs, tag = 'smem constant byte address 0x4 - core index']
  #allocation1 [shape = 'u32[144,128]{1,0:T(1,128)}', space=vmem, size = 0x12000, scoped, tag = 'internal scratch']
  #allocation2 [shape = 'f32[1,1]{1,0:T(1,128)S(1)}', space=vmem, size = 0x200, scoped, tag = 'scoped memory for moe_forward.1']
  %s0 = inlined_call_operand.vmem [shape: f32[4,8,32], index: 0, kind: input, shape index: {}]
  %s1 = inlined_call_operand.vmem [shape: f32[1,32], index: 1, kind: input, shape index: {}]
  %s2 = inlined_call_operand.<no memory space> [shape: f32[1,1], index: 2, kind: input, shape index: {}]
  %s3 = inlined_call_operand.vmem [shape: f32[4,32,24], index: 3, kind: input, shape index: {}]
  %s4 = inlined_call_operand.vmem [shape: f32[4,1,24], index: 4, kind: input, shape index: {}]
  %s5 = inlined_call_operand.vmem [shape: f32[4,24,16], index: 5, kind: input, shape index: {}]
  %s6 = inlined_call_operand.vmem [shape: f32[4,1,16], index: 6, kind: input, shape index: {}]
  %s7 = inlined_call_operand.hbm [shape: f32[8,16], index: 7, kind: output, shape index: {0}]
  %s8 = inlined_call_operand.vmem [shape: f32[8,2], index: 8, kind: output, shape index: {1}]
  %9 = xla_tuple %s7, %s8
  %s10 = sld [smem:[#allocation0]]
  $region46: #{moe_forward.1} parent=0
    _
  %s12 = ssub.s32 1, %s10
  %s13 = scalar_select 0, %s12, %s10
  %v14 = vstv %s2
  %15 = vst [vmem:[#allocation2] sm:$0x1] %v14
  $region1: #{moe_forward.1} parent=0
    #allocation3 [shape = 'u8[4096]{0}', space=vmem, size = 0x1000, scoped, tag = 'output window, operand 0, single buffered']
    #allocation4 [shape = 's32[1]{0}', space=sflag, size = 0x4, scoped, tag = 'scoped memory for moe_forward.1']
    %16 = vsyncpa [#allocation4], 0
    // Predicated region
    $region2: #{moe_forward.1} parent=1 // pred_check
      _
    $region3: #{moe_forward.1} parent=1 // pred_check_branch
      %18 = sbr.rel (0) target = $region5
    $region4: #{moe_forward.1} parent=1 // pred_region
      _
    $region5: #{moe_forward.1} parent=1 // pred_fallthru
      _
    // Predicated region
    $region6: #{moe_forward.1} parent=1 // pred_check
      _
    $region7: #{moe_forward.1} parent=1 // pred_check_branch
      %20 = sbr.rel (0) target = $region9
    $region8: #{moe_forward.1} parent=1 // pred_region
      _
    $region9: #{moe_forward.1} parent=1 // pred_fallthru
      _
    // Predicated region
    $region10: #{moe_forward.1} parent=1 // pred_check
      _
    $region11: #{moe_forward.1} parent=1 // pred_check_branch
      %22 = sbr.rel (0) target = $region13
    $region12: #{moe_forward.1} parent=1 // pred_region
      _
    $region13: #{moe_forward.1} parent=1 // pred_fallthru
      _
    // Predicated region
    $region14: #{moe_forward.1} parent=1 // pred_check
      _
    $region15: #{moe_forward.1} parent=1 // pred_check_branch
      %24 = sbr.rel (0) target = $region17
    $region16: #{moe_forward.1} parent=1 // pred_region
      _
    $region17: #{moe_forward.1} parent=1 // pred_fallthru
      _
    // Predicated region
    $region18: #{moe_forward.1} parent=1 // pred_check
      _
    $region19: #{moe_forward.1} parent=1 // pred_check_branch
      %26 = sbr.rel (0) target = $region21
    $region20: #{moe_forward.1} parent=1 // pred_region
      _
    $region21: #{moe_forward.1} parent=1 // pred_fallthru
      _
    // Predicated region
    $region22: #{moe_forward.1} parent=1 // pred_check
      _
    $region23: #{moe_forward.1} parent=1 // pred_check_branch
      %28 = sbr.rel (0) target = $region25
    $region24: #{moe_forward.1} parent=1 // pred_region
      _
    $region25: #{moe_forward.1} parent=1 // pred_fallthru
      _
    // Predicated region
    $region26: #{moe_forward.1} parent=1 // pred_check
      _
    $region27: #{moe_forward.1} parent=1 // pred_check_branch
      %30 = sbr.rel (0) target = $region29
    $region28: #{moe_forward.1} parent=1 // pred_region
      _
    $region29: #{moe_forward.1} parent=1 // pred_fallthru
      _
    %v31 = vld [vmem:[%s0] sm:$0xff]
    %v32 = vld [vmem:[%s0 + $0x8] sm:$0xff]
    %v33 = vld [vmem:[%s0 + $0x10] sm:$0xff]
    %v34 = vld [vmem:[%s0 + $0x18] sm:$0xff]
    %v35 = vld [vmem:[%s1] sm:$0x1]
    %v37 = vlaneseq
    %v38 = vshrl.u32 %v37, 7
    %v39 = vsub.s32 0, %v38
    %v40 = vrot.slane %v35, %v39
    %v42 = vmul.f32 %v31, %v40
    %vm43 = vcmask 261120
    %v44 = vsel %vm43, %v42, 0.0
    %45 = vadd.xlane.f32.xlu0 %v44
    %v46 = vpop.xlane.xlu0 %45
    %v47 = vmul.f32 %v32, %v40
    %v48 = vsel %vm43, %v47, 0.0
    %49 = vadd.xlane.f32.xlu0 %v48
    %v50 = vpop.xlane.xlu0 %49
    %v51 = vmul.f32 %v33, %v40
    %v52 = vsel %vm43, %v51, 0.0
    %53 = vadd.xlane.f32.xlu0 %v52
    %v54 = vpop.xlane.xlu0 %53
    %v55 = vmul.f32 %v34, %v40
    %v56 = vsel %vm43, %v55, 0.0
    %57 = vadd.xlane.f32.xlu0 %v56
    %v58 = vpop.xlane.xlu0 %57
    %vm59 = vcmask 7168
    %v60 = vsel %vm59, %v46, %v50
    %vm61 = vcmask 15360
    %v62 = vsel %vm61, %v60, %v54
    %vm63 = vcmask 23552
    %v64 = vsel %vm63, %v62, %v58
    %v65 = vld [vmem:[#allocation2] sm:$0x1]
    %v67 = vlaneseq
    %v68 = vshrl.u32 %v67, 7
    %v69 = vsub.s32 0, %v68
    %v70 = vrot.slane %v65, %v69
    %71 = vset.pattern.permute.xlu0 0
    %72 = vperm.xlu0 %71, %v70
    %v73 = vpop.permute.xlu0 %72
    %v75 = vadd.f32 %v64, %v73
    %vm76 = vcmask 31744
    %v77 = vsel %vm76, %v75, -inf
    %78 = vmax.xlane.f32.xlu0 %v77
    %v79 = vpop.xlane.xlu0 %78
    %v80 = vsub.f32 %v75, %v79
    %v81 = vmul.f32 %v80, 1.442695
    %v82 = vpow.pop %v81
    %v83 = vsel %vm76, %v82, 0.0
    %84 = vadd.xlane.f32.xlu0 %v83
    %v85 = vpop.xlane.xlu0 %84
    %v86 = vrcp.pop %v85
    %v87 = vmul.f32 %v82, %v86
    %v88 = vlaneseq
    %v89 = vand.u32 %v88, 127
    %v90 = vsel %vm76, %v87, -inf
    %91 = vmax.xlane.f32.xlu0 %v90
    %v92 = vpop.xlane.xlu0 %91
    %vm93 = vcmp.eq.f32.partialorder %v87, %v92
    %v94 = vsel %vm93, %v89, 4
    %v95 = vsel %vm76, %v94, 2147483647
    %v96 = vand.u32 %v95, 65535
    %v97 = vshra.s32 %v95, 16
    %v98 = vcvt.s32.f32 %v96
    %v99 = vcvt.s32.f32 %v97
    %100 = vmin.xlane.f32.xlu0 %v99
    %v101 = vpop.xlane.xlu0 %100
    %vm102 = vcmp.eq.f32.partialorder %v99, %v101
    %v103 = vsel %vm102, %v98, inf
    %104 = vmin.xlane.f32.xlu0 %v103
    %v105 = vpop.xlane.xlu0 %104
    %v106 = vcvt.f32.s32 %v105
    %v107 = vcvt.f32.s32 %v101
    %v108 = vshll.u32 %v107, 16
    %v109 = vadd.s32 %v108, %v106
    %vm110 = vcmp.eq.s32.totalorder %v89, %v109
    %v111 = vsel %vm110, -inf, %v87
    %v112 = vsel %vm76, %v111, -inf
    %113 = vmax.xlane.f32.xlu0 %v112
    %v114 = vpop.xlane.xlu0 %113
    %vm115 = vcmp.eq.f32.partialorder %v111, %v114
    %v116 = vsel %vm115, %v89, 4
    %v117 = vsel %vm76, %v116, 2147483647
    %v118 = vand.u32 %v117, 65535
    %v119 = vshra.s32 %v117, 16
    %v120 = vcvt.s32.f32 %v118
    %v121 = vcvt.s32.f32 %v119
    %122 = vmin.xlane.f32.xlu0 %v121
    %v123 = vpop.xlane.xlu0 %122
    %vm124 = vcmp.eq.f32.partialorder %v121, %v123
    %v125 = vsel %vm124, %v120, inf
    %126 = vmin.xlane.f32.xlu0 %v125
    %v127 = vpop.xlane.xlu0 %126
    %v128 = vcvt.f32.s32 %v127
    %v129 = vcvt.f32.s32 %v123
    %v130 = vshll.u32 %v129, 16
    %v131 = vadd.s32 %v130, %v128
    %v132 = vld [vmem:[%s3] sm:$0xff]
    %v133 = vld [vmem:[%s3 + $0x8] sm:$0xff]
    %v134 = vld [vmem:[%s3 + $0x10] sm:$0xff]
    %v135 = vld [vmem:[%s3 + $0x18] sm:$0xff]
    %v136 = vld [vmem:[%s3 + $0x20] sm:$0xff]
    %v137 = vld [vmem:[%s3 + $0x28] sm:$0xff]
    %v138 = vld [vmem:[%s3 + $0x30] sm:$0xff]
    %v139 = vld [vmem:[%s3 + $0x38] sm:$0xff]
    %v140 = vld [vmem:[%s3 + $0x40] sm:$0xff]
    %v141 = vld [vmem:[%s3 + $0x48] sm:$0xff]
    %v142 = vld [vmem:[%s3 + $0x50] sm:$0xff]
    %v143 = vld [vmem:[%s3 + $0x58] sm:$0xff]
    %v144 = vld [vmem:[%s3 + $0x60] sm:$0xff]
    %v145 = vld [vmem:[%s3 + $0x68] sm:$0xff]
    %v146 = vld [vmem:[%s3 + $0x70] sm:$0xff]
    %v147 = vld [vmem:[%s3 + $0x78] sm:$0xff]
    %v148 = vld [vmem:[%s4] sm:$0x1]
    %v149 = vld [vmem:[%s4 + $0x1] sm:$0x1]
    %v150 = vld [vmem:[%s4 + $0x2] sm:$0x1]
    %v151 = vld [vmem:[%s4 + $0x3] sm:$0x1]
    %v152 = vld [vmem:[%s5] sm:$0xff]
    %v153 = vld [vmem:[%s5 + $0x8] sm:$0xff]
    %v154 = vld [vmem:[%s5 + $0x10] sm:$0xff]
    %v155 = vld [vmem:[%s5 + $0x18] sm:$0xff]
    %v156 = vld [vmem:[%s5 + $0x20] sm:$0xff]
    %v157 = vld [vmem:[%s5 + $0x28] sm:$0xff]
    %v158 = vld [vmem:[%s5 + $0x30] sm:$0xff]
    %v159 = vld [vmem:[%s5 + $0x38] sm:$0xff]
    %v160 = vld [vmem:[%s5 + $0x40] sm:$0xff]
    %v161 = vld [vmem:[%s5 + $0x48] sm:$0xff]
    %v162 = vld [vmem:[%s5 + $0x50] sm:$0xff]
    %v163 = vld [vmem:[%s5 + $0x58] sm:$0xff]
    %v164 = vld [vmem:[%s6] sm:$0x1]
    %v165 = vld [vmem:[%s6 + $0x1] sm:$0x1]
    %v166 = vld [vmem:[%s6 + $0x2] sm:$0x1]
    %v167 = vld [vmem:[%s6 + $0x3] sm:$0x1]
    %v169 = vlaneseq
    %v170 = vshrl.u32 %v169, 7
    %v171 = vsub.s32 0, %v170
    %v172 = vrot.slane %v148, %v171
    %v175 = vsel %vm43, %v31, 0
    %177 = vmatprep.subr.mxu0 0.0
    %178 = vmatpush1.msra.mxu0 0.0
    %179 = vmatprep.subr.mxu0 0.0
    %180 = vmatpush1.msra.mxu0 0.0
    %181 = vmatprep.subr.mxu0 0.0
    %182 = vmatpush1.msra.mxu0 0.0
    %183 = vmatprep.subr.mxu0 0.0
    %184 = vmatpush1.msra.mxu0 0.0
    %185 = vmatprep.subr.mxu0 0.0
    %186 = vmatpush1.msra.mxu0 0.0
    %187 = vmatprep.subr.mxu0 0.0
    %188 = vmatpush1.msra.mxu0 0.0
    %189 = vmatprep.subr.mxu0 0.0
    %190 = vmatpush1.msra.mxu0 0.0
    %191 = vmatprep.subr.mxu0 0.0
    %192 = vmatpush1.msra.mxu0 0.0
    %193 = vmatprep.subr.mxu0 0.0
    %194 = vmatpush1.msra.mxu0 0.0
    %195 = vmatprep.subr.mxu0 0.0
    %196 = vmatpush1.msra.mxu0 0.0
    %197 = vmatprep.subr.mxu0 0.0
    %198 = vmatpush1.msra.mxu0 0.0
    %199 = vmatprep.subr.mxu0 0.0
    %200 = vmatpush1.msra.mxu0 0.0
    %201 = vmatprep.subr.mxu0 0.0
    %202 = vmatpush1.msra.mxu0 %v135
    %203 = vmatprep.subr.mxu0 0.0
    %204 = vmatpush1.msra.mxu0 %v134
    %205 = vmatprep.subr.mxu0 0.0
    %206 = vmatpush1.msra.mxu0 %v133
    %207 = vmatprep.subr.mxu0 0.0
    %208 = vmatpush1.msra.mxu0 %v132
    %209 = vmatprep.subr.mxu0 0.0
    %210 = vmatpush2.msra.mxu0 0.0
    %211 = vmatprep.subr.mxu0 0.0
    %212 = vmatpush2.msra.mxu0 0.0
    %213 = vmatprep.subr.mxu0 0.0
    %214 = vmatpush2.msra.mxu0 0.0
    %215 = vmatprep.subr.mxu0 0.0
    %216 = vmatpush2.msra.mxu0 0.0
    %217 = vmatprep.subr.mxu0 0.0
    %218 = vmatpush2.msra.mxu0 0.0
    %219 = vmatprep.subr.mxu0 0.0
    %220 = vmatpush2.msra.mxu0 0.0
    %221 = vmatprep.subr.mxu0 0.0
    %222 = vmatpush2.msra.mxu0 0.0
    %223 = vmatprep.subr.mxu0 0.0
    %224 = vmatpush2.msra.mxu0 0.0
    %225 = vmatprep.subr.mxu0 0.0
    %226 = vmatpush2.msra.mxu0 0.0
    %227 = vmatprep.subr.mxu0 0.0
    %228 = vmatpush2.msra.mxu0 0.0
    %229 = vmatprep.subr.mxu0 0.0
    %230 = vmatpush2.msra.mxu0 0.0
    %231 = vmatprep.subr.mxu0 0.0
    %232 = vmatpush2.msra.mxu0 0.0
    %233 = vmatprep.subr.mxu0 0.0
    %234 = vmatpush2.msra.mxu0 0.0
    %235 = vmatprep.subr.mxu0 0.0
    %236 = vmatpush2.msra.mxu0 0.0
    %237 = vmatprep.subr.mxu0 0.0
    %238 = vmatpush2.msra.mxu0 0.0
    %239 = vmatprep.subr.mxu0 0.0
    %240 = vmatpush2.msra.mxu0 0.0
    %241 = vmatprep.mubr.f32.mxu0 0.0
    %242 = vmatmul.mubr.f32.gmra.mxu0 %v175
    %v243 = vpop.f32.mrf.mxu0
    %v244 = vadd.f32 %v172, %v243
    %v245 = vpop.f32.mrf.mxu0
    %246 = vdwg.mxu0
    %v247 = vmax.f32 %v244, 0.0
    %v249 = vlaneseq
    %v250 = vshrl.u32 %v249, 7
    %v251 = vsub.s32 0, %v250
    %v252 = vrot.slane %v164, %v251
    %vm254 = vcmask 195584
    %v256 = vsel %vm254, %v247, 0
    %258 = vmatprep.subr.mxu0 0.0
    %259 = vmatpush1.msra.mxu0 0.0
    %260 = vmatprep.subr.mxu0 0.0
    %261 = vmatpush1.msra.mxu0 0.0
    %262 = vmatprep.subr.mxu0 0.0
    %263 = vmatpush1.msra.mxu0 0.0
    %264 = vmatprep.subr.mxu0 0.0
    %265 = vmatpush1.msra.mxu0 0.0
    %266 = vmatprep.subr.mxu0 0.0
    %267 = vmatpush1.msra.mxu0 0.0
    %268 = vmatprep.subr.mxu0 0.0
    %269 = vmatpush1.msra.mxu0 0.0
    %270 = vmatprep.subr.mxu0 0.0
    %271 = vmatpush1.msra.mxu0 0.0
    %272 = vmatprep.subr.mxu0 0.0
    %273 = vmatpush1.msra.mxu0 0.0
    %274 = vmatprep.subr.mxu0 0.0
    %275 = vmatpush1.msra.mxu0 0.0
    %276 = vmatprep.subr.mxu0 0.0
    %277 = vmatpush1.msra.mxu0 0.0
    %278 = vmatprep.subr.mxu0 0.0
    %279 = vmatpush1.msra.mxu0 0.0
    %280 = vmatprep.subr.mxu0 0.0
    %281 = vmatpush1.msra.mxu0 0.0
    %282 = vmatprep.subr.mxu0 0.0
    %283 = vmatpush1.msra.mxu0 0.0
    %284 = vmatprep.subr.mxu0 0.0
    %285 = vmatpush1.msra.mxu0 %v154
    %286 = vmatprep.subr.mxu0 0.0
    %287 = vmatpush1.msra.mxu0 %v153
    %288 = vmatprep.subr.mxu0 0.0
    %289 = vmatpush1.msra.mxu0 %v152
    %290 = vmatprep.subr.mxu0 0.0
    %291 = vmatpush2.msra.mxu0 0.0
    %292 = vmatprep.subr.mxu0 0.0
    %293 = vmatpush2.msra.mxu0 0.0
    %294 = vmatprep.subr.mxu0 0.0
    %295 = vmatpush2.msra.mxu0 0.0
    %296 = vmatprep.subr.mxu0 0.0
    %297 = vmatpush2.msra.mxu0 0.0
    %298 = vmatprep.subr.mxu0 0.0
    %299 = vmatpush2.msra.mxu0 0.0
    %300 = vmatprep.subr.mxu0 0.0
    %301 = vmatpush2.msra.mxu0 0.0
    %302 = vmatprep.subr.mxu0 0.0
    %303 = vmatpush2.msra.mxu0 0.0
    %304 = vmatprep.subr.mxu0 0.0
    %305 = vmatpush2.msra.mxu0 0.0
    %306 = vmatprep.subr.mxu0 0.0
    %307 = vmatpush2.msra.mxu0 0.0
    %308 = vmatprep.subr.mxu0 0.0
    %309 = vmatpush2.msra.mxu0 0.0
    %310 = vmatprep.subr.mxu0 0.0
    %311 = vmatpush2.msra.mxu0 0.0
    %312 = vmatprep.subr.mxu0 0.0
    %313 = vmatpush2.msra.mxu0 0.0
    %314 = vmatprep.subr.mxu0 0.0
    %315 = vmatpush2.msra.mxu0 0.0
    %316 = vmatprep.subr.mxu0 0.0
    %317 = vmatpush2.msra.mxu0 0.0
    %318 = vmatprep.subr.mxu0 0.0
    %319 = vmatpush2.msra.mxu0 0.0
    %320 = vmatprep.subr.mxu0 0.0
    %321 = vmatpush2.msra.mxu0 0.0
    %322 = vmatprep.mubr.f32.mxu0 0.0
    %323 = vmatmul.mubr.f32.gmra.mxu0 %v256
    %v324 = vpop.f32.mrf.mxu0
    %v325 = vadd.f32 %v252, %v324
    %v326 = vpop.f32.mrf.mxu0
    %327 = vdwg.mxu0
    %vm328 = vcmp.eq.s32.totalorder %v109, 0
    %v329 = vsel %vm328, 1, 0
    %v330 = vcvt.s32.f32 %v329
    %v331 = vmul.f32 %v92, %v330
    %vm332 = vcmp.eq.s32.totalorder %v131, 0
    %v333 = vsel %vm332, 1, 0
    %v334 = vcvt.s32.f32 %v333
    %v335 = vmul.f32 %v114, %v334
    %v336 = vadd.f32 %v331, %v335
    %v337 = vmul.f32 %v336, %v325
    %v338 = vadd.f32 %v337, 0.0
    %v340 = vlaneseq
    %v341 = vshrl.u32 %v340, 7
    %v342 = vsub.s32 0, %v341
    %v343 = vrot.slane %v149, %v342
    %v346 = vsel %vm43, %v32, 0
    %348 = vmatprep.subr.mxu0 0.0
    %349 = vmatpush1.msra.mxu0 0.0
    %350 = vmatprep.subr.mxu0 0.0
    %351 = vmatpush1.msra.mxu0 0.0
    %352 = vmatprep.subr.mxu0 0.0
    %353 = vmatpush1.msra.mxu0 0.0
    %354 = vmatprep.subr.mxu0 0.0
    %355 = vmatpush1.msra.mxu0 0.0
    %356 = vmatprep.subr.mxu0 0.0
    %357 = vmatpush1.msra.mxu0 0.0
    %358 = vmatprep.subr.mxu0 0.0
    %359 = vmatpush1.msra.mxu0 0.0
    %360 = vmatprep.subr.mxu0 0.0
    %361 = vmatpush1.msra.mxu0 0.0
    %362 = vmatprep.subr.mxu0 0.0
    %363 = vmatpush1.msra.mxu0 0.0
    %364 = vmatprep.subr.mxu0 0.0
    %365 = vmatpush1.msra.mxu0 0.0
    %366 = vmatprep.subr.mxu0 0.0
    %367 = vmatpush1.msra.mxu0 0.0
    %368 = vmatprep.subr.mxu0 0.0
    %369 = vmatpush1.msra.mxu0 0.0
    %370 = vmatprep.subr.mxu0 0.0
    %371 = vmatpush1.msra.mxu0 0.0
    %372 = vmatprep.subr.mxu0 0.0
    %373 = vmatpush1.msra.mxu0 %v139
    %374 = vmatprep.subr.mxu0 0.0
    %375 = vmatpush1.msra.mxu0 %v138
    %376 = vmatprep.subr.mxu0 0.0
    %377 = vmatpush1.msra.mxu0 %v137
    %378 = vmatprep.subr.mxu0 0.0
    %379 = vmatpush1.msra.mxu0 %v136
    %380 = vmatprep.subr.mxu0 0.0
    %381 = vmatpush2.msra.mxu0 0.0
    %382 = vmatprep.subr.mxu0 0.0
    %383 = vmatpush2.msra.mxu0 0.0
    %384 = vmatprep.subr.mxu0 0.0
    %385 = vmatpush2.msra.mxu0 0.0
    %386 = vmatprep.subr.mxu0 0.0
    %387 = vmatpush2.msra.mxu0 0.0
    %388 = vmatprep.subr.mxu0 0.0
    %389 = vmatpush2.msra.mxu0 0.0
    %390 = vmatprep.subr.mxu0 0.0
    %391 = vmatpush2.msra.mxu0 0.0
    %392 = vmatprep.subr.mxu0 0.0
    %393 = vmatpush2.msra.mxu0 0.0
    %394 = vmatprep.subr.mxu0 0.0
    %395 = vmatpush2.msra.mxu0 0.0
    %396 = vmatprep.subr.mxu0 0.0
    %397 = vmatpush2.msra.mxu0 0.0
    %398 = vmatprep.subr.mxu0 0.0
    %399 = vmatpush2.msra.mxu0 0.0
    %400 = vmatprep.subr.mxu0 0.0
    %401 = vmatpush2.msra.mxu0 0.0
    %402 = vmatprep.subr.mxu0 0.0
    %403 = vmatpush2.msra.mxu0 0.0
    %404 = vmatprep.subr.mxu0 0.0
    %405 = vmatpush2.msra.mxu0 0.0
    %406 = vmatprep.subr.mxu0 0.0
    %407 = vmatpush2.msra.mxu0 0.0
    %408 = vmatprep.subr.mxu0 0.0
    %409 = vmatpush2.msra.mxu0 0.0
    %410 = vmatprep.subr.mxu0 0.0
    %411 = vmatpush2.msra.mxu0 0.0
    %412 = vmatprep.mubr.f32.mxu0 0.0
    %413 = vmatmul.mubr.f32.gmra.mxu0 %v346
    %v414 = vpop.f32.mrf.mxu0
    %v415 = vadd.f32 %v343, %v414
    %v416 = vpop.f32.mrf.mxu0
    %417 = vdwg.mxu0
    %v418 = vmax.f32 %v415, 0.0
    %v420 = vlaneseq
    %v421 = vshrl.u32 %v420, 7
    %v422 = vsub.s32 0, %v421
    %v423 = vrot.slane %v165, %v422
    %v426 = vsel %vm254, %v418, 0
    %428 = vmatprep.subr.mxu0 0.0
    %429 = vmatpush1.msra.mxu0 0.0
    %430 = vmatprep.subr.mxu0 0.0
    %431 = vmatpush1.msra.mxu0 0.0
    %432 = vmatprep.subr.mxu0 0.0
    %433 = vmatpush1.msra.mxu0 0.0
    %434 = vmatprep.subr.mxu0 0.0
    %435 = vmatpush1.msra.mxu0 0.0
    %436 = vmatprep.subr.mxu0 0.0
    %437 = vmatpush1.msra.mxu0 0.0
    %438 = vmatprep.subr.mxu0 0.0
    %439 = vmatpush1.msra.mxu0 0.0
    %440 = vmatprep.subr.mxu0 0.0
    %441 = vmatpush1.msra.mxu0 0.0
    %442 = vmatprep.subr.mxu0 0.0
    %443 = vmatpush1.msra.mxu0 0.0
    %444 = vmatprep.subr.mxu0 0.0
    %445 = vmatpush1.msra.mxu0 0.0
    %446 = vmatprep.subr.mxu0 0.0
    %447 = vmatpush1.msra.mxu0 0.0
    %448 = vmatprep.subr.mxu0 0.0
    %449 = vmatpush1.msra.mxu0 0.0
    %450 = vmatprep.subr.mxu0 0.0
    %451 = vmatpush1.msra.mxu0 0.0
    %452 = vmatprep.subr.mxu0 0.0
    %453 = vmatpush1.msra.mxu0 0.0
    %454 = vmatprep.subr.mxu0 0.0
    %455 = vmatpush1.msra.mxu0 %v157
    %456 = vmatprep.subr.mxu0 0.0
    %457 = vmatpush1.msra.mxu0 %v156
    %458 = vmatprep.subr.mxu0 0.0
    %459 = vmatpush1.msra.mxu0 %v155
    %460 = vmatprep.subr.mxu0 0.0
    %461 = vmatpush2.msra.mxu0 0.0
    %462 = vmatprep.subr.mxu0 0.0
    %463 = vmatpush2.msra.mxu0 0.0
    %464 = vmatprep.subr.mxu0 0.0
    %465 = vmatpush2.msra.mxu0 0.0
    %466 = vmatprep.subr.mxu0 0.0
    %467 = vmatpush2.msra.mxu0 0.0
    %468 = vmatprep.subr.mxu0 0.0
    %469 = vmatpush2.msra.mxu0 0.0
    %470 = vmatprep.subr.mxu0 0.0
    %471 = vmatpush2.msra.mxu0 0.0
    %472 = vmatprep.subr.mxu0 0.0
    %473 = vmatpush2.msra.mxu0 0.0
    %474 = vmatprep.subr.mxu0 0.0
    %475 = vmatpush2.msra.mxu0 0.0
    %476 = vmatprep.subr.mxu0 0.0
    %477 = vmatpush2.msra.mxu0 0.0
    %478 = vmatprep.subr.mxu0 0.0
    %479 = vmatpush2.msra.mxu0 0.0
    %480 = vmatprep.subr.mxu0 0.0
    %481 = vmatpush2.msra.mxu0 0.0
    %482 = vmatprep.subr.mxu0 0.0
    %483 = vmatpush2.msra.mxu0 0.0
    %484 = vmatprep.subr.mxu0 0.0
    %485 = vmatpush2.msra.mxu0 0.0
    %486 = vmatprep.subr.mxu0 0.0
    %487 = vmatpush2.msra.mxu0 0.0
    %488 = vmatprep.subr.mxu0 0.0
    %489 = vmatpush2.msra.mxu0 0.0
    %490 = vmatprep.subr.mxu0 0.0
    %491 = vmatpush2.msra.mxu0 0.0
    %492 = vmatprep.mubr.f32.mxu0 0.0
    %493 = vmatmul.mubr.f32.gmra.mxu0 %v426
    %v494 = vpop.f32.mrf.mxu0
    %v495 = vadd.f32 %v423, %v494
    %v496 = vpop.f32.mrf.mxu0
    %497 = vdwg.mxu0
    %vm498 = vcmp.eq.s32.totalorder %v109, 1
    %v499 = vsel %vm498, 1, 0
    %v500 = vcvt.s32.f32 %v499
    %v501 = vmul.f32 %v92, %v500
    %vm502 = vcmp.eq.s32.totalorder %v131, 1
    %v503 = vsel %vm502, 1, 0
    %v504 = vcvt.s32.f32 %v503
    %v505 = vmul.f32 %v114, %v504
    %v506 = vadd.f32 %v501, %v505
    %v507 = vmul.f32 %v506, %v495
    %v508 = vadd.f32 %v338, %v507
    %v510 = vlaneseq
    %v511 = vshrl.u32 %v510, 7
    %v512 = vsub.s32 0, %v511
    %v513 = vrot.slane %v150, %v512
    %v516 = vsel %vm43, %v33, 0
    %518 = vmatprep.subr.mxu0 0.0
    %519 = vmatpush1.msra.mxu0 0.0
    %520 = vmatprep.subr.mxu0 0.0
    %521 = vmatpush1.msra.mxu0 0.0
    %522 = vmatprep.subr.mxu0 0.0
    %523 = vmatpush1.msra.mxu0 0.0
    %524 = vmatprep.subr.mxu0 0.0
    %525 = vmatpush1.msra.mxu0 0.0
    %526 = vmatprep.subr.mxu0 0.0
    %527 = vmatpush1.msra.mxu0 0.0
    %528 = vmatprep.subr.mxu0 0.0
    %529 = vmatpush1.msra.mxu0 0.0
    %530 = vmatprep.subr.mxu0 0.0
    %531 = vmatpush1.msra.mxu0 0.0
    %532 = vmatprep.subr.mxu0 0.0
    %533 = vmatpush1.msra.mxu0 0.0
    %534 = vmatprep.subr.mxu0 0.0
    %535 = vmatpush1.msra.mxu0 0.0
    %536 = vmatprep.subr.mxu0 0.0
    %537 = vmatpush1.msra.mxu0 0.0
    %538 = vmatprep.subr.mxu0 0.0
    %539 = vmatpush1.msra.mxu0 0.0
    %540 = vmatprep.subr.mxu0 0.0
    %541 = vmatpush1.msra.mxu0 0.0
    %542 = vmatprep.subr.mxu0 0.0
    %543 = vmatpush1.msra.mxu0 %v143
    %544 = vmatprep.subr.mxu0 0.0
    %545 = vmatpush1.msra.mxu0 %v142
    %546 = vmatprep.subr.mxu0 0.0
    %547 = vmatpush1.msra.mxu0 %v141
    %548 = vmatprep.subr.mxu0 0.0
    %549 = vmatpush1.msra.mxu0 %v140
    %550 = vmatprep.subr.mxu0 0.0
    %551 = vmatpush2.msra.mxu0 0.0
    %552 = vmatprep.subr.mxu0 0.0
    %553 = vmatpush2.msra.mxu0 0.0
    %554 = vmatprep.subr.mxu0 0.0
    %555 = vmatpush2.msra.mxu0 0.0
    %556 = vmatprep.subr.mxu0 0.0
    %557 = vmatpush2.msra.mxu0 0.0
    %558 = vmatprep.subr.mxu0 0.0
    %559 = vmatpush2.msra.mxu0 0.0
    %560 = vmatprep.subr.mxu0 0.0
    %561 = vmatpush2.msra.mxu0 0.0
    %562 = vmatprep.subr.mxu0 0.0
    %563 = vmatpush2.msra.mxu0 0.0
    %564 = vmatprep.subr.mxu0 0.0
    %565 = vmatpush2.msra.mxu0 0.0
    %566 = vmatprep.subr.mxu0 0.0
    %567 = vmatpush2.msra.mxu0 0.0
    %568 = vmatprep.subr.mxu0 0.0
    %569 = vmatpush2.msra.mxu0 0.0
    %570 = vmatprep.subr.mxu0 0.0
    %571 = vmatpush2.msra.mxu0 0.0
    %572 = vmatprep.subr.mxu0 0.0
    %573 = vmatpush2.msra.mxu0 0.0
    %574 = vmatprep.subr.mxu0 0.0
    %575 = vmatpush2.msra.mxu0 0.0
    %576 = vmatprep.subr.mxu0 0.0
    %577 = vmatpush2.msra.mxu0 0.0
    %578 = vmatprep.subr.mxu0 0.0
    %579 = vmatpush2.msra.mxu0 0.0
    %580 = vmatprep.subr.mxu0 0.0
    %581 = vmatpush2.msra.mxu0 0.0
    %582 = vmatprep.mubr.f32.mxu0 0.0
    %583 = vmatmul.mubr.f32.gmra.mxu0 %v516
    %v584 = vpop.f32.mrf.mxu0
    %v585 = vadd.f32 %v513, %v584
    %v586 = vpop.f32.mrf.mxu0
    %587 = vdwg.mxu0
    %v588 = vmax.f32 %v585, 0.0
    %v590 = vlaneseq
    %v591 = vshrl.u32 %v590, 7
    %v592 = vsub.s32 0, %v591
    %v593 = vrot.slane %v166, %v592
    %v596 = vsel %vm254, %v588, 0
    %598 = vmatprep.subr.mxu0 0.0
    %599 = vmatpush1.msra.mxu0 0.0
    %600 = vmatprep.subr.mxu0 0.0
    %601 = vmatpush1.msra.mxu0 0.0
    %602 = vmatprep.subr.mxu0 0.0
    %603 = vmatpush1.msra.mxu0 0.0
    %604 = vmatprep.subr.mxu0 0.0
    %605 = vmatpush1.msra.mxu0 0.0
    %606 = vmatprep.subr.mxu0 0.0
    %607 = vmatpush1.msra.mxu0 0.0
    %608 = vmatprep.subr.mxu0 0.0
    %609 = vmatpush1.msra.mxu0 0.0
    %610 = vmatprep.subr.mxu0 0.0
    %611 = vmatpush1.msra.mxu0 0.0
    %612 = vmatprep.subr.mxu0 0.0
    %613 = vmatpush1.msra.mxu0 0.0
    %614 = vmatprep.subr.mxu0 0.0
    %615 = vmatpush1.msra.mxu0 0.0
    %616 = vmatprep.subr.mxu0 0.0
    %617 = vmatpush1.msra.mxu0 0.0
    %618 = vmatprep.subr.mxu0 0.0
    %619 = vmatpush1.msra.mxu0 0.0
    %620 = vmatprep.subr.mxu0 0.0
    %621 = vmatpush1.msra.mxu0 0.0
    %622 = vmatprep.subr.mxu0 0.0
    %623 = vmatpush1.msra.mxu0 0.0
    %624 = vmatprep.subr.mxu0 0.0
    %625 = vmatpush1.msra.mxu0 %v160
    %626 = vmatprep.subr.mxu0 0.0
    %627 = vmatpush1.msra.mxu0 %v159
    %628 = vmatprep.subr.mxu0 0.0
    %629 = vmatpush1.msra.mxu0 %v158
    %630 = vmatprep.subr.mxu0 0.0
    %631 = vmatpush2.msra.mxu0 0.0
    %632 = vmatprep.subr.mxu0 0.0
    %633 = vmatpush2.msra.mxu0 0.0
    %634 = vmatprep.subr.mxu0 0.0
    %635 = vmatpush2.msra.mxu0 0.0
    %636 = vmatprep.subr.mxu0 0.0
    %637 = vmatpush2.msra.mxu0 0.0
    %638 = vmatprep.subr.mxu0 0.0
    %639 = vmatpush2.msra.mxu0 0.0
    %640 = vmatprep.subr.mxu0 0.0
    %641 = vmatpush2.msra.mxu0 0.0
    %642 = vmatprep.subr.mxu0 0.0
    %643 = vmatpush2.msra.mxu0 0.0
    %644 = vmatprep.subr.mxu0 0.0
    %645 = vmatpush2.msra.mxu0 0.0
    %646 = vmatprep.subr.mxu0 0.0
    %647 = vmatpush2.msra.mxu0 0.0
    %648 = vmatprep.subr.mxu0 0.0
    %649 = vmatpush2.msra.mxu0 0.0
    %650 = vmatprep.subr.mxu0 0.0
    %651 = vmatpush2.msra.mxu0 0.0
    %652 = vmatprep.subr.mxu0 0.0
    %653 = vmatpush2.msra.mxu0 0.0
    %654 = vmatprep.subr.mxu0 0.0
    %655 = vmatpush2.msra.mxu0 0.0
    %656 = vmatprep.subr.mxu0 0.0
    %657 = vmatpush2.msra.mxu0 0.0
    %658 = vmatprep.subr.mxu0 0.0
    %659 = vmatpush2.msra.mxu0 0.0
    %660 = vmatprep.subr.mxu0 0.0
    %661 = vmatpush2.msra.mxu0 0.0
    %662 = vmatprep.mubr.f32.mxu0 0.0
    %663 = vmatmul.mubr.f32.gmra.mxu0 %v596
    %v664 = vpop.f32.mrf.mxu0
    %v665 = vadd.f32 %v593, %v664
    %v666 = vpop.f32.mrf.mxu0
    %667 = vdwg.mxu0
    %vm668 = vcmp.eq.s32.totalorder %v109, 2
    %v669 = vsel %vm668, 1, 0
    %v670 = vcvt.s32.f32 %v669
    %v671 = vmul.f32 %v92, %v670
    %vm672 = vcmp.eq.s32.totalorder %v131, 2
    %v673 = vsel %vm672, 1, 0
    %v674 = vcvt.s32.f32 %v673
    %v675 = vmul.f32 %v114, %v674
    %v676 = vadd.f32 %v671, %v675
    %v677 = vmul.f32 %v676, %v665
    %v678 = vadd.f32 %v508, %v677
    %v680 = vlaneseq
    %v681 = vshrl.u32 %v680, 7
    %v682 = vsub.s32 0, %v681
    %v683 = vrot.slane %v151, %v682
    %v686 = vsel %vm43, %v34, 0
    %688 = vmatprep.subr.mxu0 0.0
    %689 = vmatpush1.msra.mxu0 0.0
    %690 = vmatprep.subr.mxu0 0.0
    %691 = vmatpush1.msra.mxu0 0.0
    %692 = vmatprep.subr.mxu0 0.0
    %693 = vmatpush1.msra.mxu0 0.0
    %694 = vmatprep.subr.mxu0 0.0
    %695 = vmatpush1.msra.mxu0 0.0
    %696 = vmatprep.subr.mxu0 0.0
    %697 = vmatpush1.msra.mxu0 0.0
    %698 = vmatprep.subr.mxu0 0.0
    %699 = vmatpush1.msra.mxu0 0.0
    %700 = vmatprep.subr.mxu0 0.0
    %701 = vmatpush1.msra.mxu0 0.0
    %702 = vmatprep.subr.mxu0 0.0
    %703 = vmatpush1.msra.mxu0 0.0
    %704 = vmatprep.subr.mxu0 0.0
    %705 = vmatpush1.msra.mxu0 0.0
    %706 = vmatprep.subr.mxu0 0.0
    %707 = vmatpush1.msra.mxu0 0.0
    %708 = vmatprep.subr.mxu0 0.0
    %709 = vmatpush1.msra.mxu0 0.0
    %710 = vmatprep.subr.mxu0 0.0
    %711 = vmatpush1.msra.mxu0 0.0
    %712 = vmatprep.subr.mxu0 0.0
    %713 = vmatpush1.msra.mxu0 %v147
    %714 = vmatprep.subr.mxu0 0.0
    %715 = vmatpush1.msra.mxu0 %v146
    %716 = vmatprep.subr.mxu0 0.0
    %717 = vmatpush1.msra.mxu0 %v145
    %718 = vmatprep.subr.mxu0 0.0
    %719 = vmatpush1.msra.mxu0 %v144
    %720 = vmatprep.subr.mxu0 0.0
    %721 = vmatpush2.msra.mxu0 0.0
    %722 = vmatprep.subr.mxu0 0.0
    %723 = vmatpush2.msra.mxu0 0.0
    %724 = vmatprep.subr.mxu0 0.0
    %725 = vmatpush2.msra.mxu0 0.0
    %726 = vmatprep.subr.mxu0 0.0
    %727 = vmatpush2.msra.mxu0 0.0
    %728 = vmatprep.subr.mxu0 0.0
    %729 = vmatpush2.msra.mxu0 0.0
    %730 = vmatprep.subr.mxu0 0.0
    %731 = vmatpush2.msra.mxu0 0.0
    %732 = vmatprep.subr.mxu0 0.0
    %733 = vmatpush2.msra.mxu0 0.0
    %734 = vmatprep.subr.mxu0 0.0
    %735 = vmatpush2.msra.mxu0 0.0
    %736 = vmatprep.subr.mxu0 0.0
    %737 = vmatpush2.msra.mxu0 0.0
    %738 = vmatprep.subr.mxu0 0.0
    %739 = vmatpush2.msra.mxu0 0.0
    %740 = vmatprep.subr.mxu0 0.0
    %741 = vmatpush2.msra.mxu0 0.0
    %742 = vmatprep.subr.mxu0 0.0
    %743 = vmatpush2.msra.mxu0 0.0
    %744 = vmatprep.subr.mxu0 0.0
    %745 = vmatpush2.msra.mxu0 0.0
    %746 = vmatprep.subr.mxu0 0.0
    %747 = vmatpush2.msra.mxu0 0.0
    %748 = vmatprep.subr.mxu0 0.0
    %749 = vmatpush2.msra.mxu0 0.0
    %750 = vmatprep.subr.mxu0 0.0
    %751 = vmatpush2.msra.mxu0 0.0
    %752 = vmatprep.mubr.f32.mxu0 0.0
    %753 = vmatmul.mubr.f32.gmra.mxu0 %v686
    %v754 = vpop.f32.mrf.mxu0
    %v755 = vadd.f32 %v683, %v754
    %v756 = vpop.f32.mrf.mxu0
    %757 = vdwg.mxu0
    %v758 = vmax.f32 %v755, 0.0
    %v760 = vlaneseq
    %v761 = vshrl.u32 %v760, 7
    %v762 = vsub.s32 0, %v761
    %v763 = vrot.slane %v167, %v762
    %v766 = vsel %vm254, %v758, 0
    %768 = vmatprep.subr.mxu0 0.0
    %769 = vmatpush1.msra.mxu0 0.0
    %770 = vmatprep.subr.mxu0 0.0
    %771 = vmatpush1.msra.mxu0 0.0
    %772 = vmatprep.subr.mxu0 0.0
    %773 = vmatpush1.msra.mxu0 0.0
    %774 = vmatprep.subr.mxu0 0.0
    %775 = vmatpush1.msra.mxu0 0.0
    %776 = vmatprep.subr.mxu0 0.0
    %777 = vmatpush1.msra.mxu0 0.0
    %778 = vmatprep.subr.mxu0 0.0
    %779 = vmatpush1.msra.mxu0 0.0
    %780 = vmatprep.subr.mxu0 0.0
    %781 = vmatpush1.msra.mxu0 0.0
    %782 = vmatprep.subr.mxu0 0.0
    %783 = vmatpush1.msra.mxu0 0.0
    %784 = vmatprep.subr.mxu0 0.0
    %785 = vmatpush1.msra.mxu0 0.0
    %786 = vmatprep.subr.mxu0 0.0
    %787 = vmatpush1.msra.mxu0 0.0
    %788 = vmatprep.subr.mxu0 0.0
    %789 = vmatpush1.msra.mxu0 0.0
    %790 = vmatprep.subr.mxu0 0.0
    %791 = vmatpush1.msra.mxu0 0.0
    %792 = vmatprep.subr.mxu0 0.0
    %793 = vmatpush1.msra.mxu0 0.0
    %794 = vmatprep.subr.mxu0 0.0
    %795 = vmatpush1.msra.mxu0 %v163
    %796 = vmatprep.subr.mxu0 0.0
    %797 = vmatpush1.msra.mxu0 %v162
    %798 = vmatprep.subr.mxu0 0.0
    %799 = vmatpush1.msra.mxu0 %v161
    %800 = vmatprep.subr.mxu0 0.0
    %801 = vmatpush2.msra.mxu0 0.0
    %802 = vmatprep.subr.mxu0 0.0
    %803 = vmatpush2.msra.mxu0 0.0
    %804 = vmatprep.subr.mxu0 0.0
    %805 = vmatpush2.msra.mxu0 0.0
    %806 = vmatprep.subr.mxu0 0.0
    %807 = vmatpush2.msra.mxu0 0.0
    %808 = vmatprep.subr.mxu0 0.0
    %809 = vmatpush2.msra.mxu0 0.0
    %810 = vmatprep.subr.mxu0 0.0
    %811 = vmatpush2.msra.mxu0 0.0
    %812 = vmatprep.subr.mxu0 0.0
    %813 = vmatpush2.msra.mxu0 0.0
    %814 = vmatprep.subr.mxu0 0.0
    %815 = vmatpush2.msra.mxu0 0.0
    %816 = vmatprep.subr.mxu0 0.0
    %817 = vmatpush2.msra.mxu0 0.0
    %818 = vmatprep.subr.mxu0 0.0
    %819 = vmatpush2.msra.mxu0 0.0
    %820 = vmatprep.subr.mxu0 0.0
    %821 = vmatpush2.msra.mxu0 0.0
    %822 = vmatprep.subr.mxu0 0.0
    %823 = vmatpush2.msra.mxu0 0.0
    %824 = vmatprep.subr.mxu0 0.0
    %825 = vmatpush2.msra.mxu0 0.0
    %826 = vmatprep.subr.mxu0 0.0
    %827 = vmatpush2.msra.mxu0 0.0
    %828 = vmatprep.subr.mxu0 0.0
    %829 = vmatpush2.msra.mxu0 0.0
    %830 = vmatprep.subr.mxu0 0.0
    %831 = vmatpush2.msra.mxu0 0.0
    %832 = vmatprep.mubr.f32.mxu0 0.0
    %833 = vmatmul.mubr.f32.gmra.mxu0 %v766
    %v834 = vpop.f32.mrf.mxu0
    %v835 = vadd.f32 %v763, %v834
    %v836 = vpop.f32.mrf.mxu0
    %837 = vdwg.mxu0
    %vm838 = vcmp.eq.s32.totalorder %v109, 3
    %v839 = vsel %vm838, 1, 0
    %v840 = vcvt.s32.f32 %v839
    %v841 = vmul.f32 %v92, %v840
    %vm842 = vcmp.eq.s32.totalorder %v131, 3
    %v843 = vsel %vm842, 1, 0
    %v844 = vcvt.s32.f32 %v843
    %v845 = vmul.f32 %v114, %v844
    %v846 = vadd.f32 %v841, %v845
    %v847 = vmul.f32 %v846, %v835
    %v848 = vadd.f32 %v678, %v847
    %vm849 = vcmask 130048
    %850 = vst.msk [vmem:[#allocation3] sm:$0xff] %vm849, %v848
    %v851 = vsel %vm59, %v92, %v114
    %852 = vst.msk [vmem:[%s8] sm:$0xff] %vm61, %v851
    // Predicated region
    $region30: #{moe_forward.1} parent=1 // pred_check
      _
    $region31: #{moe_forward.1} parent=1 // pred_check_branch
      %854 = sbr.rel (0) target = $region33
    $region32: #{moe_forward.1} parent=1 // pred_region
      %s856 = ssub.s32 128, 128
      %857 = vsyncadd [#allocation4], %s856
      %s859 = sshll.u32 [#allocation3], 4
      %s860 = int_to_ptr.vmem [resolvable:$true] %s859
      %862 = dma.vmem_to_hbm [thread:$0]  %s860, 128, %s7, [#allocation4]
    $region33: #{moe_forward.1} parent=1 // pred_fallthru
      _
    // Predicated region
    $region34: #{moe_forward.1} parent=1 // pred_check
      _
    $region35: #{moe_forward.1} parent=1 // pred_check_branch
      %864 = sbr.rel (0) target = $region37
    $region36: #{moe_forward.1} parent=1 // pred_region
      _
    $region37: #{moe_forward.1} parent=1 // pred_fallthru
      _
    // Predicated region
    $region38: #{moe_forward.1} parent=1 // pred_check
      _
    $region39: #{moe_forward.1} parent=1 // pred_check_branch
      %866 = sbr.rel (0) target = $region41
    $region40: #{moe_forward.1} parent=1 // pred_region
      %867 = dma.done [#allocation4], 128
    $region41: #{moe_forward.1} parent=1 // pred_fallthru
      _
    // Predicated region
    $region42: #{moe_forward.1} parent=1 // pred_check
      _
    $region43: #{moe_forward.1} parent=1 // pred_check_branch
      %869 = sbr.rel (0) target = $region45
    $region44: #{moe_forward.1} parent=1 // pred_region
      _
    $region45: #{moe_forward.1} parent=1 // pred_fallthru
      _
    %870 = vsyncpa [#allocation4], 1

</llo_original>
